<compile_context>
chip_gen: v5e
topology: v5e:2x2
jax: 0.10.0
libtpu: 0.0.40
codegen_flags: <defaults>
</compile_context>

<pallas_src>
import numpy as np
import jax
import jax.numpy as jnp
from jax.experimental import pallas as pl
from jax.experimental.pallas import tpu as pltpu

LANE = 128


def transition_kernel(x_ref, sb_ref, w_ref, o_ref):
    # x_ref:  (1, R, 2, Wo, 2*Cp) spatial tile of one image; row-pair axis (=2)
    #                              and column-pair interleave (last dim = 2*Cp)
    #                              expose the four 2x2 pool taps as cheap slices.
    # sb_ref: (2, 2*Cp)            row 0 = folded BN scale, row 1 = folded BN bias
    #                              (each tiled x2 to match the interleaved channels).
    # w_ref:  (Cp, Coutp)          1x1 conv weight (Cin-major), pre-scaled by 0.25
    #                              so the pool's average is folded into the matmul.
    # o_ref:  (1, R, Wo, Coutp)
    R = o_ref.shape[1]
    Wo = o_ref.shape[2]
    Cop = o_ref.shape[3]
    Cp = x_ref.shape[4] // 2

    x = x_ref[0].astype(jnp.float32)                      # (R, 2, Wo, 2*Cp)
    scale = sb_ref[0]                                     # (2*Cp,)
    bias = sb_ref[1]                                      # (2*Cp,)
    xn = jnp.maximum(x * scale + bias, 0.0)               # BN + ReLU   (VPU)

    # 2x2 / stride-2 average pool as three VPU adds (no dense pool matmul).
    s = xn[:, 0] + xn[:, 1]                               # row pair    -> (R, Wo, 2*Cp)
    pooled = s[:, :, :Cp] + s[:, :, Cp:]                  # column pair -> (R, Wo, Cp)

    # 1x1 conv on post-pool resolution; f32 accumulation on the MXU.
    y = jnp.dot(pooled.reshape(R * Wo, Cp).astype(w_ref.dtype),
                w_ref[...],
                preferred_element_type=jnp.float32)       # (R*Wo, Coutp)
    o_ref[0] = y.reshape(R, Wo, Cop).astype(o_ref.dtype)


def _round_up(x, m):
    return -(-x // m) * m


def _pick_row_tile(Ho, per_row_bytes, budget=2 << 20):
    """Largest divisor of Ho whose input block stays under ~2 MiB (double-buffered)."""
    best = 1
    for r in range(1, Ho + 1):
        if Ho % r == 0 and r * per_row_bytes <= budget:
            best = r
    return best


def transition_forward(x_nchw, gamma, beta, conv_w, eps=1e-5):
    """x_nchw: (N, Cin, H, W), conv_w: (Cout, Cin, 1, 1) -> (N, Cout, H//2, W//2)."""
    N, Cin, H, W = x_nchw.shape
    Cout = conv_w.shape[0]
    assert H % 2 == 0 and W % 2 == 0
    Ho, Wo = H // 2, W // 2

    # Single NCHW->NHWC layout change; batch statistics computed on the NHWC
    # array so XLA fuses the reduction with the transpose (one HBM pass over x).
    x_nhwc = jnp.transpose(x_nchw, (0, 2, 3, 1))          # (N, H, W, Cin)
    xf = x_nhwc.astype(jnp.float32)
    mean = jnp.mean(xf, axis=(0, 1, 2))                   # training-mode batch stats
    var = jnp.var(xf, axis=(0, 1, 2))                     # biased, matches PyTorch fwd
    scale = (gamma.astype(jnp.float32) / jnp.sqrt(var + eps))
    bias = beta.astype(jnp.float32) - mean * scale

    # Lane-dense channel padding (no-op for real DenseNet widths 128/256/512).
    Cp = _round_up(max(Cin, 1), LANE)
    Cop = _round_up(max(Cout, 1), LANE)
    if Cp != Cin:
        x_nhwc = jnp.pad(x_nhwc, ((0, 0), (0, 0), (0, 0), (0, Cp - Cin)))
        scale = jnp.pad(scale, (0, Cp - Cin))
        bias = jnp.pad(bias, (0, Cp - Cin))

    # Free reshape exposing the 2x2 pool taps: (N, H, W, Cp) -> (N, Ho, 2, Wo, 2*Cp).
    x_pool = x_nhwc.reshape(N, Ho, 2, Wo, 2 * Cp)

    # Fused scale/bias buffer, tiled x2 to match the column-interleaved channels.
    sb = jnp.stack([jnp.tile(scale, 2), jnp.tile(bias, 2)]).astype(jnp.float32)

    # 1x1 conv weight (Cin-major), zero-padded, with the pool's 0.25 folded in.
    w_mat = conv_w[:, :, 0, 0].T                          # (Cin, Cout)
    w_mat = jnp.pad(w_mat, ((0, Cp - Cin), (0, Cop - Cout))) * 0.25

    itemsize = jnp.dtype(x_pool.dtype).itemsize
    per_row_bytes = 2 * Wo * 2 * Cp * itemsize            # bytes per output row of input
    R = _pick_row_tile(Ho, per_row_bytes)

    out = pl.pallas_call(
        transition_kernel,
        out_shape=jax.ShapeDtypeStruct((N, Ho, Wo, Cop), x_nchw.dtype),
        grid_spec=pltpu.PrefetchScalarGridSpec(
            num_scalar_prefetch=0,
            grid=(N, Ho // R),
            in_specs=[
                pl.BlockSpec((1, R, 2, Wo, 2 * Cp), lambda n, t: (n, t, 0, 0, 0)),
                pl.BlockSpec((2, 2 * Cp), lambda n, t: (0, 0)),
                pl.BlockSpec((Cp, Cop), lambda n, t: (0, 0)),
            ],
            out_specs=pl.BlockSpec((1, R, Wo, Cop), lambda n, t: (n, t, 0, 0)),
        ),
        compiler_params=pltpu.CompilerParams(
            dimension_semantics=("parallel", "parallel")),
    )(x_pool, sb, w_mat)

    # Strip channel padding, back to PyTorch's NCHW convention.
    out = out[..., :Cout]                                 # (N, Ho, Wo, Cout)
    return jnp.transpose(out, (0, 3, 1, 2))               # (N, Cout, Ho, Wo)


def transition_reference(x, gamma, beta, conv_w, eps=1e-5):
    """Pure-JAX reference mirroring the PyTorch forward (NCHW)."""
    mean = jnp.mean(x, axis=(0, 2, 3), keepdims=True)
    var = jnp.var(x, axis=(0, 2, 3), keepdims=True)
    xn = (x - mean) / jnp.sqrt(var + eps)
    xn = xn * gamma[None, :, None, None] + beta[None, :, None, None]
    xr = jnp.maximum(xn, 0.0)
    y = jnp.einsum('nchw,oc->nohw', xr, conv_w[:, :, 0, 0])
    N, Co, H, W = y.shape
    return y.reshape(N, Co, H // 2, 2, W // 2, 2).mean(axis=(3, 5))


if __name__ == "__main__":
    # Small shapes consistent with the module: in_planes=4, out_planes=8.
    N, Cin, H, W = 2, 4, 16, 16
    Cout = 8

    key = jax.random.PRNGKey(0)
    kx, kg, kb, kw = jax.random.split(key, 4)
    x = jax.random.normal(kx, (N, Cin, H, W), dtype=jnp.float32)
    gamma = 1.0 + 0.1 * jax.random.normal(kg, (Cin,), dtype=jnp.float32)
    beta = 0.1 * jax.random.normal(kb, (Cin,), dtype=jnp.float32)
    conv_w = 0.3 * jax.random.normal(kw, (Cout, Cin, 1, 1), dtype=jnp.float32)

    fwd = jax.jit(transition_forward)
    out = jax.block_until_ready(fwd(x, gamma, beta, conv_w))

    ref = jax.block_until_ready(transition_reference(x, gamma, beta, conv_w))
    np.testing.assert_allclose(np.asarray(out), np.asarray(ref), rtol=1e-2, atol=1e-2)

    assert out.shape == (N, Cout, H // 2, W // 2)
    print("KERNEL_OK")
</pallas_src>

<mosaic_0001>
module attributes {stable_mosaic.version = 11 : i64} {
  func.func @transition_kernel(%arg0: i32, %arg1: i32, %arg2: memref<1x8x2x8x256xf32, #tpu.memory_space<vmem>>, %arg3: memref<2x256xf32, #tpu.memory_space<vmem>>, %arg4: memref<128x128xf32, #tpu.memory_space<vmem>>, %arg5: memref<1x8x8x128xf32, #tpu.memory_space<vmem>>) attributes {dimension_semantics = [#tpu.dimension_semantics<parallel>, #tpu.dimension_semantics<parallel>], iteration_bounds = array<i64: 2, 1>, scalar_prefetch = 0 : i64, scratch_operands = 0 : i64, tpu.core_type = #tpu.core_type<tc>, window_params = [{transform_indices = @transform_0, window_bounds = array<i64: 1, 8, 2, 8, 256>}, {pipeline_mode = #tpu.pipeline_mode<synchronous>, transform_indices = @transform_1, window_bounds = array<i64: 2, 256>}, {pipeline_mode = #tpu.pipeline_mode<synchronous>, transform_indices = @transform_2, window_bounds = array<i64: 128, 128>}, {transform_indices = @transform_3, window_bounds = array<i64: 1, 8, 8, 128>}]} {
    %c0 = arith.constant 0 : index
    %c0_0 = arith.constant 0 : index
    %c0_1 = arith.constant 0 : index
    %c0_2 = arith.constant 0 : index
    %c0_3 = arith.constant 0 : index
    %0 = vector.load %arg2[%c0, %c0_0, %c0_1, %c0_2, %c0_3] : memref<1x8x2x8x256xf32, #tpu.memory_space<vmem>>, vector<1x8x2x8x256xf32>
    %1 = vector.shape_cast %0 : vector<1x8x2x8x256xf32> to vector<8x2x8x256xf32>
    %c0_4 = arith.constant 0 : index
    %c0_5 = arith.constant 0 : index
    %2 = vector.load %arg3[%c0_4, %c0_5] : memref<2x256xf32, #tpu.memory_space<vmem>>, vector<1x256xf32>
    %3 = vector.shape_cast %2 : vector<1x256xf32> to vector<256xf32>
    %c1 = arith.constant 1 : index
    %c0_6 = arith.constant 0 : index
    %4 = vector.load %arg3[%c1, %c0_6] : memref<2x256xf32, #tpu.memory_space<vmem>>, vector<1x256xf32>
    %5 = vector.shape_cast %4 : vector<1x256xf32> to vector<256xf32>
    %6 = vector.shape_cast %3 : vector<256xf32> to vector<1x1x1x256xf32>
    %7 = vector.broadcast %6 : vector<1x1x1x256xf32> to vector<8x2x8x256xf32>
    %8 = arith.mulf %1, %7 : vector<8x2x8x256xf32>
    %9 = vector.shape_cast %5 : vector<256xf32> to vector<1x1x1x256xf32>
    %10 = vector.broadcast %9 : vector<1x1x1x256xf32> to vector<8x2x8x256xf32>
    %11 = arith.addf %8, %10 : vector<8x2x8x256xf32>
    %cst = arith.constant 0.000000e+00 : f32
    %12 = vector.broadcast %cst : f32 to vector<8x2x8x256xf32>
    %13 = arith.maximumf %11, %12 : vector<8x2x8x256xf32>
    %14 = vector.extract_strided_slice %13 {offsets = [0, 0, 0, 0], sizes = [8, 1, 8, 256], strides = [1, 1, 1, 1]} : vector<8x2x8x256xf32> to vector<8x1x8x256xf32>
    %15 = vector.shape_cast %14 : vector<8x1x8x256xf32> to vector<8x8x256xf32>
    %16 = vector.extract_strided_slice %13 {offsets = [0, 1, 0, 0], sizes = [8, 1, 8, 256], strides = [1, 1, 1, 1]} : vector<8x2x8x256xf32> to vector<8x1x8x256xf32>
    %17 = vector.shape_cast %16 : vector<8x1x8x256xf32> to vector<8x8x256xf32>
    %18 = arith.addf %15, %17 : vector<8x8x256xf32>
    %19 = vector.extract_strided_slice %18 {offsets = [0, 0, 0], sizes = [8, 8, 128], strides = [1, 1, 1]} : vector<8x8x256xf32> to vector<8x8x128xf32>
    %20 = vector.extract_strided_slice %18 {offsets = [0, 0, 128], sizes = [8, 8, 128], strides = [1, 1, 1]} : vector<8x8x256xf32> to vector<8x8x128xf32>
    %21 = arith.addf %19, %20 : vector<8x8x128xf32>
    %22 = vector.shape_cast %21 : vector<8x8x128xf32> to vector<64x128xf32>
    %c0_7 = arith.constant 0 : index
    %c0_8 = arith.constant 0 : index
    %23 = vector.load %arg4[%c0_7, %c0_8] : memref<128x128xf32, #tpu.memory_space<vmem>>, vector<128x128xf32>
    %cst_9 = arith.constant dense<0.000000e+00> : vector<64x128xf32>
    %24 = tpu.matmul %22, %23, %cst_9 {dimension_numbers = #tpu.dot_dimension_numbers<[1], [0], [0], [1], [0, 0, 1, 1], [], []>} : vector<64x128xf32>, vector<128x128xf32>, vector<64x128xf32> -> vector<64x128xf32>
    %25 = vector.shape_cast %24 : vector<64x128xf32> to vector<8x8x128xf32>
    %c0_10 = arith.constant 0 : index
    %c0_11 = arith.constant 0 : index
    %c0_12 = arith.constant 0 : index
    %c0_13 = arith.constant 0 : index
    %26 = vector.load %arg5[%c0_10, %c0_11, %c0_12, %c0_13] : memref<1x8x8x128xf32, #tpu.memory_space<vmem>>, vector<1x8x8x128xf32>
    %27 = vector.shape_cast %26 : vector<1x8x8x128xf32> to vector<8x8x128xf32>
    %28 = vector.shape_cast %25 : vector<8x8x128xf32> to vector<1x8x8x128xf32>
    tpu.vector_store %arg5[%c0_10, %c0_11, %c0_12, %c0_13], %28 {strides = array<i32>} : memref<1x8x8x128xf32, #tpu.memory_space<vmem>>, vector<1x8x8x128xf32>,
    return
  }
  func.func @transform_0(%arg0: i32, %arg1: i32) -> (i32, i32, i32, i32, i32) {
    %c0_i32 = arith.constant 0 : i32
    %c0_i32_0 = arith.constant 0 : i32
    %c0_i32_1 = arith.constant 0 : i32
    %c0_i32_2 = arith.constant 0 : i32
    return %arg0, %arg1, %c0_i32, %c0_i32_0, %c0_i32_1 : i32, i32, i32, i32, i32
  }
  func.func @transform_1(%arg0: i32, %arg1: i32) -> (i32, i32) {
    %c0_i32 = arith.constant 0 : i32
    %c0_i32_0 = arith.constant 0 : i32
    %c0_i32_1 = arith.constant 0 : i32
    return %c0_i32, %c0_i32_0 : i32, i32
  }
  func.func @transform_2(%arg0: i32, %arg1: i32) -> (i32, i32) {
    %c0_i32 = arith.constant 0 : i32
    %c0_i32_0 = arith.constant 0 : i32
    %c0_i32_1 = arith.constant 0 : i32
    return %c0_i32, %c0_i32_0 : i32, i32
  }
  func.func @transform_3(%arg0: i32, %arg1: i32) -> (i32, i32, i32, i32) {
    %c0_i32 = arith.constant 0 : i32
    %c0_i32_0 = arith.constant 0 : i32
    %c0_i32_1 = arith.constant 0 : i32
    return %arg0, %arg1, %c0_i32, %c0_i32_0 : i32, i32, i32, i32
  }
}

</mosaic_0001>

<llo_original>
// kernel: tile.17
$region0: #{tile.17}
  #allocation0 [shape = 's32[1]{0}', space=sflag, size = 0x4, scoped, tag = 'scoped memory for tile.17']
  %s0 = inlined_call_operand.vmem [shape: f32[128], index: 0, kind: input, shape index: {}]
  %s1 = inlined_call_operand.vmem [shape: f32[2,128], index: 1, kind: output, shape index: {}]
  // Predicated region
  $region2: #{tile.17} parent=0 // pred_check
    _
  $region3: #{tile.17} parent=0 // pred_check_branch
    %3 = sbr.rel (0) target = $region5
  $region4: #{tile.17} parent=0 // pred_region
    _
  $region5: #{tile.17} parent=0 // pred_fallthru
    _
  %v4 = vld [vmem:[%s0] ss:$0 sm:$0xff]
  %5 = vst [vmem:[%s1] sm:$0x3] %v4

// kernel: transition_forward.1
$region0: #{transition_forward.1}
  #allocation0 [shape = 'u32[]', space=smem, size = 0x4, offset = 0x4, fixed_abs, tag = 'smem constant byte address 0x4 - core index']
  #allocation1 [shape = 'u32[72,128]{1,0:T(1,128)}', space=vmem, size = 0x9000, scoped, tag = 'internal scratch']
  %s0 = inlined_call_operand.vmem [shape: f32[2,8,2,8,256], index: 0, kind: input, shape index: {}]
  %s1 = inlined_call_operand.vmem [shape: f32[2,256], index: 1, kind: input, shape index: {}]
  %s2 = inlined_call_operand.vmem [shape: f32[128,128], index: 2, kind: input, shape index: {}]
  %s3 = inlined_call_operand.vmem [shape: f32[2,8,8,128], index: 3, kind: output, shape index: {}]
  %s4 = sld [smem:[#allocation0]]
  $region45: #{transition_forward.1} parent=0
    _
  %s6 = ssub.s32 1, %s4
  %s7 = scalar_select 0, %s6, %s4
  loop: start=0, step=1, limit=4
  $region2: #{transition_forward.1} parent=0 // loop_pre_header
    _
  $region3: #{transition_forward.1} parent=0 // loop_header
    %s9 = sphi 0, %s13
    %p10 = scmp.ge.s32.totalorder %s9, 4
    %s16 = sphi 0, %s28
    %s17 = sphi 0, %s24
    %s18 = sphi 0, %s16
    %s19 = sphi 0, %s17
    %s20 = sphi 0, %s18
    %s21 = sphi 0, %s19
    %s33 = sphi 0, %s35
    %s36 = sphi 0, %s33
    %s37 = sphi 0, %s36
    %s53 = sphi 0, %s37
    %s57 = sphi 0, %s57
    %s59 = sphi 0, %s57
    %s60 = sphi 0, %s59
    %s74 = sphi 0, %s60
    %s78 = sphi 0, %s78
    %s80 = sphi 0, %s78
    %s81 = sphi 0, %s80
    %s95 = sphi 0, %s81
    %s103 = sphi 0, %s105
    %s106 = sphi 0, %s103
    %s107 = sphi 0, %s106
    %s123 = sphi 0, %s107
  $region4: #{transition_forward.1} parent=0 // loop_header_branch
    %12 = sbr.rel (%p10) target = $region8
  $region5: #{transition_forward.1} parent=0 // loop_body
    %s14 = ssub.s32 %s9, 1
    %s15 = ssub.s32 %s9, 2
    %s22 = sadd.s32 1, %s17
    %p23 = scmp.ge.s32.totalorder %s22, 1
    %s24 = scalar_select %p23, 0, %s22
    %s25 = sadd.s32 1, %s16
    %s26 = scalar_select %p23, %s25, %s16
    %p27 = scmp.ge.s32.totalorder %s26, 2
    %s28 = scalar_select %p27, 0, %s26
    %s29 = ssub.s32 %s16, %s28
    %s30 = ssub.s32 %s17, %s24
    %s31 = sor.u32 %s29, %s30
    %p32 = scmp.eq.s32.totalorder %s31, 0
    %s34 = sadd.s32 %s33, 1
    %s35 = scalar_select %p32, %s33, %s34
    %p38 = pneg %p32
    %p39 = scmp.eq.s32.totalorder %s9, 1
    %p40 = por %p38, %p39
    %p41 = scmp.ne.s32.totalorder %s33, %s36
    %p42 = scmp.eq.s32.totalorder %s9, 0
    %p43 = por %p41, %p42
    %p44 = scmp.ne.s32.totalorder %s33, %s36
    %p45 = scmp.eq.s32.totalorder %s14, 1
    %p46 = por %p44, %p45
    %p47 = scmp.ne.s32.totalorder %s36, %s37
    %p48 = scmp.eq.s32.totalorder %s14, 0
    %p49 = por %p47, %p48
    %p50 = scmp.ne.s32.totalorder %s36, %s37
    %p51 = scmp.eq.s32.totalorder %s15, 1
    %p52 = por %p50, %p51
    %p54 = scmp.ne.s32.totalorder %s37, %s53
    %p55 = scmp.eq.s32.totalorder %s15, 0
    %p56 = por %p54, %p55
    %s58 = sadd.s32 %s57, 1
    %p61 = scmp.eq.s32.totalorder %s9, 1
    %p62 = scmp.ne.s32.totalorder %s57, %s59
    %p63 = scmp.eq.s32.totalorder %s9, 0
    %p64 = por %p62, %p63
    %p65 = scmp.ne.s32.totalorder %s57, %s59
    %p66 = scmp.eq.s32.totalorder %s14, 1
    %p67 = por %p65, %p66
    %p68 = scmp.ne.s32.totalorder %s59, %s60
    %p69 = scmp.eq.s32.totalorder %s14, 0
    %p70 = por %p68, %p69
    %p71 = scmp.ne.s32.totalorder %s59, %s60
    %p72 = scmp.eq.s32.totalorder %s15, 1
    %p73 = por %p71, %p72
    %p75 = scmp.ne.s32.totalorder %s60, %s74
    %p76 = scmp.eq.s32.totalorder %s15, 0
    %p77 = por %p75, %p76
    %s79 = sadd.s32 %s78, 1
    %p82 = scmp.eq.s32.totalorder %s9, 1
    %p83 = scmp.ne.s32.totalorder %s78, %s80
    %p84 = scmp.eq.s32.totalorder %s9, 0
    %p85 = por %p83, %p84
    %p86 = scmp.ne.s32.totalorder %s78, %s80
    %p87 = scmp.eq.s32.totalorder %s14, 1
    %p88 = por %p86, %p87
    %p89 = scmp.ne.s32.totalorder %s80, %s81
    %p90 = scmp.eq.s32.totalorder %s14, 0
    %p91 = por %p89, %p90
    %p92 = scmp.ne.s32.totalorder %s80, %s81
    %p93 = scmp.eq.s32.totalorder %s15, 1
    %p94 = por %p92, %p93
    %p96 = scmp.ne.s32.totalorder %s81, %s95
    %p97 = scmp.eq.s32.totalorder %s15, 0
    %p98 = por %p96, %p97
    %s99 = ssub.s32 %s16, %s28
    %s100 = ssub.s32 %s17, %s24
    %s101 = sor.u32 %s99, %s100
    %p102 = scmp.eq.s32.totalorder %s101, 0
    %s104 = sadd.s32 %s103, 1
    %s105 = scalar_select %p102, %s103, %s104
    %p108 = pneg %p102
    %p109 = scmp.eq.s32.totalorder %s9, 1
    %p110 = por %p108, %p109
    %p111 = scmp.ne.s32.totalorder %s103, %s106
    %p112 = scmp.eq.s32.totalorder %s9, 0
    %p113 = por %p111, %p112
    %p114 = scmp.ne.s32.totalorder %s103, %s106
    %p115 = scmp.eq.s32.totalorder %s14, 1
    %p116 = por %p114, %p115
    %p117 = scmp.ne.s32.totalorder %s106, %s107
    %p118 = scmp.eq.s32.totalorder %s14, 0
    %p119 = por %p117, %p118
    %p120 = scmp.ne.s32.totalorder %s106, %s107
    %p121 = scmp.eq.s32.totalorder %s15, 1
    %p122 = por %p120, %p121
    %p124 = scmp.ne.s32.totalorder %s107, %s123
    %p125 = scmp.eq.s32.totalorder %s15, 0
    %p126 = por %p124, %p125
    %p127 = scmp.le.s32.totalorder 1, %s9
    %p128 = scmp.lt.s32.totalorder %s9, 3
    %p129 = pnand %p127, %p128
    %p130 = pneg %p129
    // Predicated region
    $region9: #{transition_forward.1} parent=5 // pred_check
      _
    $region10: #{transition_forward.1} parent=5 // pred_check_branch
      %132 = sbr.rel (%p129) target = $region12
    $region11: #{transition_forward.1} parent=5 // pred_region
      %s133 = ssub.s32 %s9, 1
      // Predicated region
      $region13: #{transition_forward.1} parent=11 // pred_check
        %p134 = pneg %p70
      $region14: #{transition_forward.1} parent=11 // pred_check_branch
        %136 = sbr.rel (%p134) target = $region16
      $region15: #{transition_forward.1} parent=11 // pred_region
        _
      $region16: #{transition_forward.1} parent=11 // pred_fallthru
        _
      // Predicated region
      $region17: #{transition_forward.1} parent=11 // pred_check
        %p137 = pneg %p91
      $region18: #{transition_forward.1} parent=11 // pred_check_branch
        %139 = sbr.rel (%p137) target = $region20
      $region19: #{transition_forward.1} parent=11 // pred_region
        _
      $region20: #{transition_forward.1} parent=11 // pred_fallthru
        _
    $region12: #{transition_forward.1} parent=5 // pred_fallthru
      _
    %p140 = scmp.lt.s32.totalorder %s9, 2
    // Predicated region
    $region21: #{transition_forward.1} parent=5 // pred_check
      %p141 = pneg %p140
    $region22: #{transition_forward.1} parent=5 // pred_check_branch
      %143 = sbr.rel (%p141) target = $region24
    $region23: #{transition_forward.1} parent=5 // pred_region
      // Predicated region
      $region25: #{transition_forward.1} parent=23 // pred_check
        %p144 = pneg %p43
      $region26: #{transition_forward.1} parent=23 // pred_check_branch
        %146 = sbr.rel (%p144) target = $region28
      $region27: #{transition_forward.1} parent=23 // pred_region
        %s147 = smul.u32 8, %s17
        %p148 = scmp.lt.s32.totalorder %s16, 1
        %s149 = scalar_select %p148, %s16, 1
        %p150 = scmp.lt.s32.totalorder %s147, 7
        %s151 = scalar_select %p150, %s147, 7
        %s152 = smul.addr %s151, 4
        %s153 = smul.addr %s149, 32
        %s154 = sadd.s32 %s152, %s153
        %s155 = smul.addr %s154, 8
        %s156 = scalar_lea.vmem %s0, %s155
        %s157 = smul.u32 8, %s17
      $region28: #{transition_forward.1} parent=23 // pred_fallthru
        _
    $region24: #{transition_forward.1} parent=5 // pred_fallthru
      _
    %p158 = scmp.le.s32.totalorder 1, %s9
    %p159 = scmp.lt.s32.totalorder %s9, 3
    %p160 = pnand %p158, %p159
    %p161 = pneg %p160
    // Predicated region
    $region29: #{transition_forward.1} parent=5 // pred_check
      _
    $region30: #{transition_forward.1} parent=5 // pred_check_branch
      %163 = sbr.rel (%p160) target = $region32
    $region31: #{transition_forward.1} parent=5 // pred_region
      %s164 = ssub.s32 %s9, 1
      %s165 = smul.u32 8, %s19
      %p166 = scmp.lt.s32.totalorder %s18, 1
      %s167 = scalar_select %p166, %s18, 1
      %p168 = scmp.lt.s32.totalorder %s165, 7
      %s169 = scalar_select %p168, %s165, 7
      %s170 = smul.addr %s169, 4
      %s171 = smul.addr %s167, 32
      %s172 = sadd.s32 %s170, %s171
      %s173 = smul.addr %s172, 8
      %s174 = scalar_lea.vmem %s0, %s173
      %p175 = pneg %p49
      %p176 = pneg %p46
      %p177 = pneg %p70
      %p178 = pneg %p67
      %p179 = pneg %p91
      %p180 = pneg %p88
      %p181 = pneg %p119
      %p182 = pneg %p116
      %s183 = smul.u32 8, %s19
      %p184 = scmp.lt.s32.totalorder %s18, 1
      %s185 = scalar_select %p184, %s18, 1
      %p186 = scmp.lt.s32.totalorder %s183, 7
      %s187 = scalar_select %p186, %s183, 7
      %s188 = smul.addr %s185, 8
      %s189 = sadd.s32 %s187, %s188
      %s190 = smul.addr %s189, 8
      %s191 = scalar_lea.vmem %s3, %s190
      %s192 = smul.u32 8, %s19
      %p193 = scmp.lt.s32.totalorder %s18, 1
      %s194 = scalar_select %p193, %s18, 1
      %p195 = scmp.lt.s32.totalorder %s192, 7
      %s196 = scalar_select %p195, %s192, 7
      %s197 = smul.addr %s196, 4
      %s198 = smul.addr %s194, 32
      %s199 = sadd.s32 %s197, %s198
      %s200 = smul.addr %s199, 8
      %s201 = scalar_lea.vmem %s0, %s200
      %s202 = smul.u32 8, %s19
      %s203 = smul.u32 8, %s19
      %p204 = scmp.lt.s32.totalorder %s18, 1
      %s205 = scalar_select %p204, %s18, 1
      %p206 = scmp.lt.s32.totalorder %s203, 7
      %s207 = scalar_select %p206, %s203, 7
      %s208 = smul.addr %s205, 8
      %s209 = sadd.s32 %s207, %s208
      %s210 = smul.addr %s209, 8
      %s211 = scalar_lea.vmem %s3, %s210
      %s212 = smul.u32 8, %s19
      %v213 = vld [vmem:[%s201] sm:$0xff]
      %v214 = vld [vmem:[%s201 + $0x8] sm:$0xff]
      %v215 = vld [vmem:[%s201 + $0x10] sm:$0xff]
      %v216 = vld [vmem:[%s201 + $0x18] sm:$0xff]
      %v217 = vld [vmem:[%s201 + $0x20] sm:$0xff]
      %v218 = vld [vmem:[%s201 + $0x28] sm:$0xff]
      %v219 = vld [vmem:[%s201 + $0x30] sm:$0xff]
      %v220 = vld [vmem:[%s201 + $0x38] sm:$0xff]
      %v221 = vld [vmem:[%s201 + $0x40] sm:$0xff]
      %v222 = vld [vmem:[%s201 + $0x48] sm:$0xff]
      %v223 = vld [vmem:[%s201 + $0x50] sm:$0xff]
      %v224 = vld [vmem:[%s201 + $0x58] sm:$0xff]
      %v225 = vld [vmem:[%s201 + $0x60] sm:$0xff]
      %v226 = vld [vmem:[%s201 + $0x68] sm:$0xff]
      %v227 = vld [vmem:[%s201 + $0x70] sm:$0xff]
      %v228 = vld [vmem:[%s201 + $0x78] sm:$0xff]
      %v229 = vld [vmem:[%s201 + $0x80] sm:$0xff]
      %v230 = vld [vmem:[%s201 + $0x88] sm:$0xff]
      %v231 = vld [vmem:[%s201 + $0x90] sm:$0xff]
      %v232 = vld [vmem:[%s201 + $0x98] sm:$0xff]
      %v233 = vld [vmem:[%s201 + $0xa0] sm:$0xff]
      %v234 = vld [vmem:[%s201 + $0xa8] sm:$0xff]
      %v235 = vld [vmem:[%s201 + $0xb0] sm:$0xff]
      %v236 = vld [vmem:[%s201 + $0xb8] sm:$0xff]
      %v237 = vld [vmem:[%s201 + $0xc0] sm:$0xff]
      %v238 = vld [vmem:[%s201 + $0xc8] sm:$0xff]
      %v239 = vld [vmem:[%s201 + $0xd0] sm:$0xff]
      %v240 = vld [vmem:[%s201 + $0xd8] sm:$0xff]
      %v241 = vld [vmem:[%s201 + $0xe0] sm:$0xff]
      %v242 = vld [vmem:[%s201 + $0xe8] sm:$0xff]
      %v243 = vld [vmem:[%s201 + $0xf0] sm:$0xff]
      %v244 = vld [vmem:[%s201 + $0xf8] sm:$0xff]
      %v245 = vld [vmem:[%s1] ss:$2 sm:$0x3]
      %s246 = scalar_lea.vmem %s1, 1
      %v247 = vld [vmem:[%s246] ss:$2 sm:$0x3]
      %v249 = vperm.slane %v245, 0
      %v250 = vperm.slane %v245, 1
      %v253 = vmul.f32 %v213, %v249
      %v254 = vmul.f32 %v214, %v250
      %v255 = vmul.f32 %v215, %v249
      %v256 = vmul.f32 %v216, %v250
      %v257 = vmul.f32 %v217, %v249
      %v258 = vmul.f32 %v218, %v250
      %v259 = vmul.f32 %v219, %v249
      %v260 = vmul.f32 %v220, %v250
      %v261 = vmul.f32 %v221, %v249
      %v262 = vmul.f32 %v222, %v250
      %v263 = vmul.f32 %v223, %v249
      %v264 = vmul.f32 %v224, %v250
      %v265 = vmul.f32 %v225, %v249
      %v266 = vmul.f32 %v226, %v250
      %v267 = vmul.f32 %v227, %v249
      %v268 = vmul.f32 %v228, %v250
      %v269 = vmul.f32 %v229, %v249
      %v270 = vmul.f32 %v230, %v250
      %v271 = vmul.f32 %v231, %v249
      %v272 = vmul.f32 %v232, %v250
      %v273 = vmul.f32 %v233, %v249
      %v274 = vmul.f32 %v234, %v250
      %v275 = vmul.f32 %v235, %v249
      %v276 = vmul.f32 %v236, %v250
      %v277 = vmul.f32 %v237, %v249
      %v278 = vmul.f32 %v238, %v250
      %v279 = vmul.f32 %v239, %v249
      %v280 = vmul.f32 %v240, %v250
      %v281 = vmul.f32 %v241, %v249
      %v282 = vmul.f32 %v242, %v250
      %v283 = vmul.f32 %v243, %v249
      %v284 = vmul.f32 %v244, %v250
      %v286 = vperm.slane %v247, 0
      %v287 = vperm.slane %v247, 1
      %v290 = vadd.f32 %v253, %v286
      %v291 = vadd.f32 %v254, %v287
      %v292 = vadd.f32 %v255, %v286
      %v293 = vadd.f32 %v256, %v287
      %v294 = vadd.f32 %v257, %v286
      %v295 = vadd.f32 %v258, %v287
      %v296 = vadd.f32 %v259, %v286
      %v297 = vadd.f32 %v260, %v287
      %v298 = vadd.f32 %v261, %v286
      %v299 = vadd.f32 %v262, %v287
      %v300 = vadd.f32 %v263, %v286
      %v301 = vadd.f32 %v264, %v287
      %v302 = vadd.f32 %v265, %v286
      %v303 = vadd.f32 %v266, %v287
      %v304 = vadd.f32 %v267, %v286
      %v305 = vadd.f32 %v268, %v287
      %v306 = vadd.f32 %v269, %v286
      %v307 = vadd.f32 %v270, %v287
      %v308 = vadd.f32 %v271, %v286
      %v309 = vadd.f32 %v272, %v287
      %v310 = vadd.f32 %v273, %v286
      %v311 = vadd.f32 %v274, %v287
      %v312 = vadd.f32 %v275, %v286
      %v313 = vadd.f32 %v276, %v287
      %v314 = vadd.f32 %v277, %v286
      %v315 = vadd.f32 %v278, %v287
      %v316 = vadd.f32 %v279, %v286
      %v317 = vadd.f32 %v280, %v287
      %v318 = vadd.f32 %v281, %v286
      %v319 = vadd.f32 %v282, %v287
      %v320 = vadd.f32 %v283, %v286
      %v321 = vadd.f32 %v284, %v287
      %v322 = vmax.f32 %v290, 0.0
      %v323 = vmax.f32 %v291, 0.0
      %v324 = vmax.f32 %v292, 0.0
      %v325 = vmax.f32 %v293, 0.0
      %v326 = vmax.f32 %v294, 0.0
      %v327 = vmax.f32 %v295, 0.0
      %v328 = vmax.f32 %v296, 0.0
      %v329 = vmax.f32 %v297, 0.0
      %v330 = vmax.f32 %v298, 0.0
      %v331 = vmax.f32 %v299, 0.0
      %v332 = vmax.f32 %v300, 0.0
      %v333 = vmax.f32 %v301, 0.0
      %v334 = vmax.f32 %v302, 0.0
      %v335 = vmax.f32 %v303, 0.0
      %v336 = vmax.f32 %v304, 0.0
      %v337 = vmax.f32 %v305, 0.0
      %v338 = vmax.f32 %v306, 0.0
      %v339 = vmax.f32 %v307, 0.0
      %v340 = vmax.f32 %v308, 0.0
      %v341 = vmax.f32 %v309, 0.0
      %v342 = vmax.f32 %v310, 0.0
      %v343 = vmax.f32 %v311, 0.0
      %v344 = vmax.f32 %v312, 0.0
      %v345 = vmax.f32 %v313, 0.0
      %v346 = vmax.f32 %v314, 0.0
      %v347 = vmax.f32 %v315, 0.0
      %v348 = vmax.f32 %v316, 0.0
      %v349 = vmax.f32 %v317, 0.0
      %v350 = vmax.f32 %v318, 0.0
      %v351 = vmax.f32 %v319, 0.0
      %v352 = vmax.f32 %v320, 0.0
      %v353 = vmax.f32 %v321, 0.0
      %v354 = vadd.f32 %v322, %v324
      %v355 = vadd.f32 %v323, %v325
      %v356 = vadd.f32 %v326, %v328
      %v357 = vadd.f32 %v327, %v329
      %v358 = vadd.f32 %v330, %v332
      %v359 = vadd.f32 %v331, %v333
      %v360 = vadd.f32 %v334, %v336
      %v361 = vadd.f32 %v335, %v337
      %v362 = vadd.f32 %v338, %v340
      %v363 = vadd.f32 %v339, %v341
      %v364 = vadd.f32 %v342, %v344
      %v365 = vadd.f32 %v343, %v345
      %v366 = vadd.f32 %v346, %v348
      %v367 = vadd.f32 %v347, %v349
      %v368 = vadd.f32 %v350, %v352
      %v369 = vadd.f32 %v351, %v353
      %v370 = vadd.f32 %v354, %v355
      %v371 = vadd.f32 %v356, %v357
      %v372 = vadd.f32 %v358, %v359
      %v373 = vadd.f32 %v360, %v361
      %v374 = vadd.f32 %v362, %v363
      %v375 = vadd.f32 %v364, %v365
      %v376 = vadd.f32 %v366, %v367
      %v377 = vadd.f32 %v368, %v369
      %v378 = vld [vmem:[%s2] sm:$0xff]
      %v379 = vld [vmem:[%s2 + $0x8] sm:$0xff]
      %v380 = vld [vmem:[%s2 + $0x10] sm:$0xff]
      %v381 = vld [vmem:[%s2 + $0x18] sm:$0xff]
      %v382 = vld [vmem:[%s2 + $0x20] sm:$0xff]
      %v383 = vld [vmem:[%s2 + $0x28] sm:$0xff]
      %v384 = vld [vmem:[%s2 + $0x30] sm:$0xff]
      %v385 = vld [vmem:[%s2 + $0x38] sm:$0xff]
      %v386 = vld [vmem:[%s2 + $0x40] sm:$0xff]
      %v387 = vld [vmem:[%s2 + $0x48] sm:$0xff]
      %v388 = vld [vmem:[%s2 + $0x50] sm:$0xff]
      %v389 = vld [vmem:[%s2 + $0x58] sm:$0xff]
      %v390 = vld [vmem:[%s2 + $0x60] sm:$0xff]
      %v391 = vld [vmem:[%s2 + $0x68] sm:$0xff]
      %v392 = vld [vmem:[%s2 + $0x70] sm:$0xff]
      %v393 = vld [vmem:[%s2 + $0x78] sm:$0xff]
      %394 = vmatpush.msra.mxu0 %v393
      %395 = vmatpush.msra.mxu0 %v392
      %396 = vmatpush.msra.mxu0 %v391
      %397 = vmatpush.msra.mxu0 %v390
      %398 = vmatpush.msra.mxu0 %v389
      %399 = vmatpush.msra.mxu0 %v388
      %400 = vmatpush.msra.mxu0 %v387
      %401 = vmatpush.msra.mxu0 %v386
      %402 = vmatpush.msra.mxu0 %v385
      %403 = vmatpush.msra.mxu0 %v384
      %404 = vmatpush.msra.mxu0 %v383
      %405 = vmatpush.msra.mxu0 %v382
      %406 = vmatpush.msra.mxu0 %v381
      %407 = vmatpush.msra.mxu0 %v380
      %408 = vmatpush.msra.mxu0 %v379
      %409 = vmatpush.msra.mxu0 %v378
      %410 = vmatmul.f32.gmra.mxu0 %v370
      %v411 = vpop.f32.mrf.mxu0
      %v412 = vadd.f32 0.0, %v411
      %413 = vmatmul.f32.gmra.mxu0 %v371
      %v414 = vpop.f32.mrf.mxu0
      %v415 = vadd.f32 0.0, %v414
      %416 = vmatmul.f32.gmra.mxu0 %v372
      %v417 = vpop.f32.mrf.mxu0
      %v418 = vadd.f32 0.0, %v417
      %419 = vmatmul.f32.gmra.mxu0 %v373
      %v420 = vpop.f32.mrf.mxu0
      %v421 = vadd.f32 0.0, %v420
      %422 = vmatmul.f32.gmra.mxu0 %v374
      %v423 = vpop.f32.mrf.mxu0
      %v424 = vadd.f32 0.0, %v423
      %425 = vmatmul.f32.gmra.mxu0 %v375
      %v426 = vpop.f32.mrf.mxu0
      %v427 = vadd.f32 0.0, %v426
      %428 = vmatmul.f32.gmra.mxu0 %v376
      %v429 = vpop.f32.mrf.mxu0
      %v430 = vadd.f32 0.0, %v429
      %431 = vmatmul.f32.gmra.mxu0 %v377
      %v432 = vpop.f32.mrf.mxu0
      %v433 = vadd.f32 0.0, %v432
      %434 = vdwg.mxu0
      %435 = vst [vmem:[%s211] sm:$0xff] %v412
      %436 = vst [vmem:[%s211 + $0x8] sm:$0xff] %v415
      %437 = vst [vmem:[%s211 + $0x10] sm:$0xff] %v418
      %438 = vst [vmem:[%s211 + $0x18] sm:$0xff] %v421
      %439 = vst [vmem:[%s211 + $0x20] sm:$0xff] %v424
      %440 = vst [vmem:[%s211 + $0x28] sm:$0xff] %v427
      %441 = vst [vmem:[%s211 + $0x30] sm:$0xff] %v430
      %442 = vst [vmem:[%s211 + $0x38] sm:$0xff] %v433
      %s443 = smul.u32 8, %s19
      %p444 = scmp.lt.s32.totalorder %s18, 1
      %s445 = scalar_select %p444, %s18, 1
      %p446 = scmp.lt.s32.totalorder %s443, 7
      %s447 = scalar_select %p446, %s443, 7
      %s448 = smul.addr %s445, 8
      %s449 = sadd.s32 %s447, %s448
      %s450 = smul.addr %s449, 8
      %s451 = scalar_lea.vmem %s3, %s450
      // Predicated region
      $region33: #{transition_forward.1} parent=31 // pred_check
        %p452 = pneg %p116
      $region34: #{transition_forward.1} parent=31 // pred_check_branch
        %454 = sbr.rel (%p452) target = $region36
      $region35: #{transition_forward.1} parent=31 // pred_region
        %s455 = smul.u32 8, %s19
      $region36: #{transition_forward.1} parent=31 // pred_fallthru
        _
    $region32: #{transition_forward.1} parent=5 // pred_fallthru
      _
    %p456 = scmp.le.s32.totalorder 2, %s9
    // Predicated region
    $region37: #{transition_forward.1} parent=5 // pred_check
      %p457 = pneg %p456
    $region38: #{transition_forward.1} parent=5 // pred_check_branch
      %459 = sbr.rel (%p457) target = $region40
    $region39: #{transition_forward.1} parent=5 // pred_region
      %s460 = ssub.s32 %s9, 2
      // Predicated region
      $region41: #{transition_forward.1} parent=39 // pred_check
        %p461 = pneg %p122
      $region42: #{transition_forward.1} parent=39 // pred_check_branch
        %463 = sbr.rel (%p461) target = $region44
      $region43: #{transition_forward.1} parent=39 // pred_region
        %s464 = smul.u32 8, %s21
        %p465 = scmp.lt.s32.totalorder %s20, 1
        %s466 = scalar_select %p465, %s20, 1
        %p467 = scmp.lt.s32.totalorder %s464, 7
        %s468 = scalar_select %p467, %s464, 7
        %s469 = smul.addr %s466, 8
        %s470 = sadd.s32 %s468, %s469
        %s471 = smul.addr %s470, 8
        %s472 = scalar_lea.vmem %s3, %s471
      $region44: #{transition_forward.1} parent=39 // pred_fallthru
        _
    $region40: #{transition_forward.1} parent=5 // pred_fallthru
      _
  $region6: #{transition_forward.1} parent=0 // loop_footer
    %s13 = sadd.s32 1, %s9
  $region7: #{transition_forward.1} parent=0 // loop_footer_branch
    %8 = sbr.rel target = $region3
  $region8: #{transition_forward.1} parent=0 // loop_exit
    _

</llo_original>
